<compile_context>
chip_gen: v7x
topology: tpu7x:2x2x1
jax: 0.10.0
libtpu: 0.0.40
codegen_flags: <defaults>
</compile_context>

<pallas_src>
import functools

import numpy as np
import jax
import jax.numpy as jnp
from jax.experimental import pallas as pl
from jax.experimental.pallas import tpu as pltpu

EPS = 1e-5


# ----------------------------------------------------------------------------
# helpers
# ----------------------------------------------------------------------------
def _tap_offsets():
    return [(dy, dx) for dy in (-1, 0, 1) for dx in (-1, 0, 1)]


def _make_tap_masks(H, W):
    """(9, H*W) f32 masks: 1 where the (dy,dx) tap reads a valid (non-padding) pixel."""
    yy, xx = np.meshgrid(np.arange(H), np.arange(W), indexing="ij")
    rows = []
    for dy, dx in _tap_offsets():
        valid = (yy + dy >= 0) & (yy + dy < H) & (xx + dx >= 0) & (xx + dx < W)
        rows.append(valid.reshape(-1))
    return np.stack(rows).astype(np.float32)


# ----------------------------------------------------------------------------
# single fused kernel: conv3x3+BN+ReLU -> conv3x3+BN+ReLU -> residual add
# ----------------------------------------------------------------------------
def _inconv_kernel(x_ref, m_ref, w1_ref, s1_ref, b1_ref,
                   w2_ref, s2_ref, b2_ref, *rest,
                   H, W, Cin, Cout, has_proj):
    # x_ref : (1, Cin, H*W)      flat NCHW image for one batch element (lane-dense)
    # m_ref : (9, H*W)           per-tap border masks (the "padding=1" zeros)
    # w*_ref: (Cout, 9*C)        im2col-ordered 3x3 weights
    # s*/b* : (Cout, 1)          folded BN scale / (bias+BN) shift
    # rest  : [wr, sr, br,] o_ref
    if has_proj:
        wr_ref, sr_ref, br_ref, o_ref = rest
    else:
        (o_ref,) = rest

    HW = H * W
    xf = x_ref[0].astype(jnp.float32)                       # (Cin, HW)

    def im2col(v):
        # v: (C, HW) -> (9*C, HW). Tap (dy,dx) is a lane rotation by dy*W+dx,
        # masked so that wrapped / out-of-row elements become the conv's zero padding.
        cols = []
        for k, (dy, dx) in enumerate(_tap_offsets()):
            off = dy * W + dx
            if off == 0:
                shifted = v
            else:
                s = off % HW
                shifted = jnp.concatenate([v[:, s:], v[:, :s]], axis=1)
            cols.append(shifted * m_ref[k:k + 1, :])
        return jnp.concatenate(cols, axis=0)

    # conv1 (K = 9*Cin) + folded BN + ReLU
    y1 = jnp.dot(w1_ref[...], im2col(xf), preferred_element_type=jnp.float32)
    y1 = jnp.maximum(y1 * s1_ref[...] + b1_ref[...], 0.0)   # (Cout, HW)

    # conv2 (K = 9*Cout) + folded BN + ReLU  — y1 never leaves the core
    y2 = jnp.dot(w2_ref[...], im2col(y1), preferred_element_type=jnp.float32)
    y2 = jnp.maximum(y2 * s2_ref[...] + b2_ref[...], 0.0)   # (Cout, HW)

    # residual branch
    if has_proj:
        r = jnp.dot(wr_ref[...], xf, preferred_element_type=jnp.float32)
        r = r * sr_ref[...] + br_ref[...]
    else:
        r = xf
    o_ref[0] = (y2 + r).astype(o_ref.dtype)


# ----------------------------------------------------------------------------
# wrapper (no HBM-touching glue: only free reshapes + tiny weight reshuffles)
# ----------------------------------------------------------------------------
def inconv_forward(x_nchw, p, in_ch, out_ch):
    N, C, H, W = x_nchw.shape
    assert C == in_ch
    HW = H * W
    has_proj = in_ch != out_ch

    xf = x_nchw.reshape(N, in_ch, HW)          # free (row-major merge of trailing dims)

    # fold conv bias + eval-mode BN into per-channel scale/shift
    s1 = p["g1"] * jax.lax.rsqrt(p["v1"] + EPS)
    sh1 = (p["b1"] - p["m1"]) * s1 + p["be1"]
    s2 = p["g2"] * jax.lax.rsqrt(p["v2"] + EPS)
    sh2 = (p["b2"] - p["m2"]) * s2 + p["be2"]

    # (3,3,Cin,Cout) HWIO -> (Cout, 9*Cin), K ordered tap-major / channel-minor
    w1 = jnp.transpose(p["w1"], (3, 0, 1, 2)).reshape(out_ch, 9 * in_ch)
    w2 = jnp.transpose(p["w2"], (3, 0, 1, 2)).reshape(out_ch, 9 * out_ch)
    masks = jnp.asarray(_make_tap_masks(H, W))

    col = lambda v: v.reshape(out_ch, 1)
    rep = lambda shape: pl.BlockSpec(shape, lambda n, _s=shape: (0,) * len(_s))

    args = [xf, masks, w1, col(s1), col(sh1), w2, col(s2), col(sh2)]
    in_specs = [
        pl.BlockSpec((1, in_ch, HW), lambda n: (n, 0, 0)),
        rep((9, HW)),
        rep((out_ch, 9 * in_ch)), rep((out_ch, 1)), rep((out_ch, 1)),
        rep((out_ch, 9 * out_ch)), rep((out_ch, 1)), rep((out_ch, 1)),
    ]
    if has_proj:
        sr = p["gr"] * jax.lax.rsqrt(p["vr"] + EPS)
        shr = p["ber"] - p["mr"] * sr
        args += [jnp.transpose(p["wr"]), col(sr), col(shr)]
        in_specs += [rep((out_ch, in_ch)), rep((out_ch, 1)), rep((out_ch, 1))]

    kernel = functools.partial(_inconv_kernel, H=H, W=W, Cin=in_ch, Cout=out_ch,
                               has_proj=has_proj)
    out = pl.pallas_call(
        kernel,
        out_shape=jax.ShapeDtypeStruct((N, out_ch, HW), x_nchw.dtype),
        grid=(N,),
        in_specs=in_specs,
        out_specs=pl.BlockSpec((1, out_ch, HW), lambda n: (n, 0, 0)),
        compiler_params=pltpu.CompilerParams(
            dimension_semantics=("parallel",),
            vmem_limit_bytes=32 * 1024 * 1024),
    )(*args)
    return out.reshape(N, out_ch, H, W)        # free split of trailing dim


# ----------------------------------------------------------------------------
# parameter construction + pure-JAX reference (for a correctness check)
# ----------------------------------------------------------------------------
def init_params(key, in_ch, out_ch):
    ks = jax.random.split(key, 12)
    p = {
        "w1": jax.random.normal(ks[0], (3, 3, in_ch, out_ch), jnp.float32) * 0.1,
        "b1": jax.random.normal(ks[1], (out_ch,), jnp.float32) * 0.05,
        "g1": 1.0 + 0.1 * jax.random.normal(ks[2], (out_ch,), jnp.float32),
        "be1": 0.05 * jax.random.normal(ks[3], (out_ch,), jnp.float32),
        "m1": 0.05 * jax.random.normal(ks[4], (out_ch,), jnp.float32),
        "v1": 1.0 + 0.1 * jnp.abs(jax.random.normal(ks[5], (out_ch,), jnp.float32)),
        "w2": jax.random.normal(ks[6], (3, 3, out_ch, out_ch), jnp.float32) * 0.1,
        "b2": jax.random.normal(ks[7], (out_ch,), jnp.float32) * 0.05,
        "g2": 1.0 + 0.1 * jax.random.normal(ks[8], (out_ch,), jnp.float32),
        "be2": 0.05 * jax.random.normal(ks[9], (out_ch,), jnp.float32),
        "m2": 0.05 * jax.random.normal(ks[10], (out_ch,), jnp.float32),
        "v2": 1.0 + 0.1 * jnp.abs(jax.random.normal(ks[11], (out_ch,), jnp.float32)),
    }
    if in_ch != out_ch:
        kr = jax.random.split(jax.random.fold_in(key, 99), 5)
        p.update({
            "wr": jax.random.normal(kr[0], (in_ch, out_ch), jnp.float32) * 0.1,
            "gr": 1.0 + 0.1 * jax.random.normal(kr[1], (out_ch,), jnp.float32),
            "ber": 0.05 * jax.random.normal(kr[2], (out_ch,), jnp.float32),
            "mr": 0.05 * jax.random.normal(kr[3], (out_ch,), jnp.float32),
            "vr": 1.0 + 0.1 * jnp.abs(jax.random.normal(kr[4], (out_ch,), jnp.float32)),
        })
    return p


def ref_forward(x_nchw, p, in_ch, out_ch):
    x = jnp.transpose(x_nchw, (0, 2, 3, 1))

    def conv(v, w):
        return jax.lax.conv_general_dilated(
            v, w, (1, 1), "SAME", dimension_numbers=("NHWC", "HWIO", "NHWC"))

    y = conv(x, p["w1"]) + p["b1"]
    y = (y - p["m1"]) / jnp.sqrt(p["v1"] + EPS) * p["g1"] + p["be1"]
    y = jnp.maximum(y, 0.0)
    y = conv(y, p["w2"]) + p["b2"]
    y = (y - p["m2"]) / jnp.sqrt(p["v2"] + EPS) * p["g2"] + p["be2"]
    y = jnp.maximum(y, 0.0)
    if in_ch != out_ch:
        r = conv(x, p["wr"].reshape(1, 1, in_ch, out_ch))
        r = (r - p["mr"]) / jnp.sqrt(p["vr"] + EPS) * p["gr"] + p["ber"]
        y = y + r
    else:
        y = y + x
    return jnp.transpose(y, (0, 3, 1, 2))


if __name__ == "__main__":
    key = jax.random.PRNGKey(0)
    in_ch, out_ch = 4, 8
    N, H, W = 2, 16, 16

    kx, kp = jax.random.split(key)
    x = jax.random.normal(kx, (N, in_ch, H, W), jnp.float32)
    params = init_params(kp, in_ch, out_ch)

    fwd = jax.jit(functools.partial(inconv_forward, in_ch=in_ch, out_ch=out_ch))
    out = jax.block_until_ready(fwd(x, params))

    ref = jax.block_until_ready(ref_forward(x, params, in_ch, out_ch))
    assert out.shape == (N, out_ch, H, W)
    assert jnp.max(jnp.abs(out - ref)) < 1e-4, "mismatch vs reference"

    print("KERNEL_OK")
</pallas_src>

<mosaic_0001>
module attributes {stable_mosaic.version = 11 : i64} {
  func.func @_inconv_kernel(%arg0: i32, %arg1: memref<1x4x256xf32, #tpu.memory_space<vmem>>, %arg2: memref<9x256xf32, #tpu.memory_space<vmem>>, %arg3: memref<8x36xf32, #tpu.memory_space<vmem>>, %arg4: memref<8x1xf32, #tpu.memory_space<vmem>>, %arg5: memref<8x1xf32, #tpu.memory_space<vmem>>, %arg6: memref<8x72xf32, #tpu.memory_space<vmem>>, %arg7: memref<8x1xf32, #tpu.memory_space<vmem>>, %arg8: memref<8x1xf32, #tpu.memory_space<vmem>>, %arg9: memref<8x4xf32, #tpu.memory_space<vmem>>, %arg10: memref<8x1xf32, #tpu.memory_space<vmem>>, %arg11: memref<8x1xf32, #tpu.memory_space<vmem>>, %arg12: memref<1x8x256xf32, #tpu.memory_space<vmem>>) attributes {dimension_semantics = [#tpu.dimension_semantics<parallel>], iteration_bounds = array<i64: 2>, scalar_prefetch = 0 : i64, scratch_operands = 0 : i64, tpu.core_type = #tpu.core_type<tc>, window_params = [{transform_indices = @transform_0, window_bounds = array<i64: 1, 4, 256>}, {pipeline_mode = #tpu.pipeline_mode<synchronous>, transform_indices = @transform_1, window_bounds = array<i64: 9, 256>}, {pipeline_mode = #tpu.pipeline_mode<synchronous>, transform_indices = @transform_2, window_bounds = array<i64: 8, 36>}, {pipeline_mode = #tpu.pipeline_mode<synchronous>, transform_indices = @transform_3, window_bounds = array<i64: 8, 1>}, {pipeline_mode = #tpu.pipeline_mode<synchronous>, transform_indices = @transform_4, window_bounds = array<i64: 8, 1>}, {pipeline_mode = #tpu.pipeline_mode<synchronous>, transform_indices = @transform_5, window_bounds = array<i64: 8, 72>}, {pipeline_mode = #tpu.pipeline_mode<synchronous>, transform_indices = @transform_6, window_bounds = array<i64: 8, 1>}, {pipeline_mode = #tpu.pipeline_mode<synchronous>, transform_indices = @transform_7, window_bounds = array<i64: 8, 1>}, {pipeline_mode = #tpu.pipeline_mode<synchronous>, transform_indices = @transform_8, window_bounds = array<i64: 8, 4>}, {pipeline_mode = #tpu.pipeline_mode<synchronous>, transform_indices = @transform_9, window_bounds = array<i64: 8, 1>}, {pipeline_mode = #tpu.pipeline_mode<synchronous>, transform_indices = @transform_10, window_bounds = array<i64: 8, 1>}, {transform_indices = @transform_11, window_bounds = array<i64: 1, 8, 256>}]} {
    %c0 = arith.constant 0 : index
    %c0_0 = arith.constant 0 : index
    %c0_1 = arith.constant 0 : index
    %0 = vector.load %arg1[%c0, %c0_0, %c0_1] : memref<1x4x256xf32, #tpu.memory_space<vmem>>, vector<1x4x256xf32>
    %1 = vector.shape_cast %0 : vector<1x4x256xf32> to vector<4x256xf32>
    %c0_2 = arith.constant 0 : index
    %c0_3 = arith.constant 0 : index
    %2 = vector.load %arg3[%c0_2, %c0_3] : memref<8x36xf32, #tpu.memory_space<vmem>>, vector<8x36xf32>
    %3 = vector.extract_strided_slice %1 {offsets = [0, 239], sizes = [4, 17], strides = [1, 1]} : vector<4x256xf32> to vector<4x17xf32>
    %4 = vector.extract_strided_slice %1 {offsets = [0, 0], sizes = [4, 239], strides = [1, 1]} : vector<4x256xf32> to vector<4x239xf32>
    %5 = tpu.concatenate %3, %4 in 1 : vector<4x17xf32>, vector<4x239xf32> -> vector<4x256xf32>
    %c0_4 = arith.constant 0 : index
    %c0_5 = arith.constant 0 : index
    %6 = vector.load %arg2[%c0_4, %c0_5] : memref<9x256xf32, #tpu.memory_space<vmem>>, vector<1x256xf32>
    %7 = vector.broadcast %6 : vector<1x256xf32> to vector<4x256xf32>
    %8 = arith.mulf %5, %7 : vector<4x256xf32>
    %9 = vector.extract_strided_slice %1 {offsets = [0, 240], sizes = [4, 16], strides = [1, 1]} : vector<4x256xf32> to vector<4x16xf32>
    %10 = vector.extract_strided_slice %1 {offsets = [0, 0], sizes = [4, 240], strides = [1, 1]} : vector<4x256xf32> to vector<4x240xf32>
    %11 = tpu.concatenate %9, %10 in 1 : vector<4x16xf32>, vector<4x240xf32> -> vector<4x256xf32>
    %c1 = arith.constant 1 : index
    %c0_6 = arith.constant 0 : index
    %12 = vector.load %arg2[%c1, %c0_6] : memref<9x256xf32, #tpu.memory_space<vmem>>, vector<1x256xf32>
    %13 = vector.broadcast %12 : vector<1x256xf32> to vector<4x256xf32>
    %14 = arith.mulf %11, %13 : vector<4x256xf32>
    %15 = vector.extract_strided_slice %1 {offsets = [0, 241], sizes = [4, 15], strides = [1, 1]} : vector<4x256xf32> to vector<4x15xf32>
    %16 = vector.extract_strided_slice %1 {offsets = [0, 0], sizes = [4, 241], strides = [1, 1]} : vector<4x256xf32> to vector<4x241xf32>
    %17 = tpu.concatenate %15, %16 in 1 : vector<4x15xf32>, vector<4x241xf32> -> vector<4x256xf32>
    %c2 = arith.constant 2 : index
    %c0_7 = arith.constant 0 : index
    %18 = vector.load %arg2[%c2, %c0_7] : memref<9x256xf32, #tpu.memory_space<vmem>>, vector<1x256xf32>
    %19 = vector.broadcast %18 : vector<1x256xf32> to vector<4x256xf32>
    %20 = arith.mulf %17, %19 : vector<4x256xf32>
    %21 = vector.extract_strided_slice %1 {offsets = [0, 255], sizes = [4, 1], strides = [1, 1]} : vector<4x256xf32> to vector<4x1xf32>
    %22 = vector.extract_strided_slice %1 {offsets = [0, 0], sizes = [4, 255], strides = [1, 1]} : vector<4x256xf32> to vector<4x255xf32>
    %23 = tpu.concatenate %21, %22 in 1 : vector<4x1xf32>, vector<4x255xf32> -> vector<4x256xf32>
    %c3 = arith.constant 3 : index
    %c0_8 = arith.constant 0 : index
    %24 = vector.load %arg2[%c3, %c0_8] : memref<9x256xf32, #tpu.memory_space<vmem>>, vector<1x256xf32>
    %25 = vector.broadcast %24 : vector<1x256xf32> to vector<4x256xf32>
    %26 = arith.mulf %23, %25 : vector<4x256xf32>
    %c4 = arith.constant 4 : index
    %c0_9 = arith.constant 0 : index
    %27 = vector.load %arg2[%c4, %c0_9] : memref<9x256xf32, #tpu.memory_space<vmem>>, vector<1x256xf32>
    %28 = vector.broadcast %27 : vector<1x256xf32> to vector<4x256xf32>
    %29 = arith.mulf %1, %28 : vector<4x256xf32>
    %30 = vector.extract_strided_slice %1 {offsets = [0, 1], sizes = [4, 255], strides = [1, 1]} : vector<4x256xf32> to vector<4x255xf32>
    %31 = vector.extract_strided_slice %1 {offsets = [0, 0], sizes = [4, 1], strides = [1, 1]} : vector<4x256xf32> to vector<4x1xf32>
    %32 = tpu.concatenate %30, %31 in 1 : vector<4x255xf32>, vector<4x1xf32> -> vector<4x256xf32>
    %c5 = arith.constant 5 : index
    %c0_10 = arith.constant 0 : index
    %33 = vector.load %arg2[%c5, %c0_10] : memref<9x256xf32, #tpu.memory_space<vmem>>, vector<1x256xf32>
    %34 = vector.broadcast %33 : vector<1x256xf32> to vector<4x256xf32>
    %35 = arith.mulf %32, %34 : vector<4x256xf32>
    %36 = vector.extract_strided_slice %1 {offsets = [0, 15], sizes = [4, 241], strides = [1, 1]} : vector<4x256xf32> to vector<4x241xf32>
    %37 = vector.extract_strided_slice %1 {offsets = [0, 0], sizes = [4, 15], strides = [1, 1]} : vector<4x256xf32> to vector<4x15xf32>
    %38 = tpu.concatenate %36, %37 in 1 : vector<4x241xf32>, vector<4x15xf32> -> vector<4x256xf32>
    %c6 = arith.constant 6 : index
    %c0_11 = arith.constant 0 : index
    %39 = vector.load %arg2[%c6, %c0_11] : memref<9x256xf32, #tpu.memory_space<vmem>>, vector<1x256xf32>
    %40 = vector.broadcast %39 : vector<1x256xf32> to vector<4x256xf32>
    %41 = arith.mulf %38, %40 : vector<4x256xf32>
    %42 = vector.extract_strided_slice %1 {offsets = [0, 16], sizes = [4, 240], strides = [1, 1]} : vector<4x256xf32> to vector<4x240xf32>
    %43 = vector.extract_strided_slice %1 {offsets = [0, 0], sizes = [4, 16], strides = [1, 1]} : vector<4x256xf32> to vector<4x16xf32>
    %44 = tpu.concatenate %42, %43 in 1 : vector<4x240xf32>, vector<4x16xf32> -> vector<4x256xf32>
    %c7 = arith.constant 7 : index
    %c0_12 = arith.constant 0 : index
    %45 = vector.load %arg2[%c7, %c0_12] : memref<9x256xf32, #tpu.memory_space<vmem>>, vector<1x256xf32>
    %46 = vector.broadcast %45 : vector<1x256xf32> to vector<4x256xf32>
    %47 = arith.mulf %44, %46 : vector<4x256xf32>
    %48 = vector.extract_strided_slice %1 {offsets = [0, 17], sizes = [4, 239], strides = [1, 1]} : vector<4x256xf32> to vector<4x239xf32>
    %49 = vector.extract_strided_slice %1 {offsets = [0, 0], sizes = [4, 17], strides = [1, 1]} : vector<4x256xf32> to vector<4x17xf32>
    %50 = tpu.concatenate %48, %49 in 1 : vector<4x239xf32>, vector<4x17xf32> -> vector<4x256xf32>
    %c8 = arith.constant 8 : index
    %c0_13 = arith.constant 0 : index
    %51 = vector.load %arg2[%c8, %c0_13] : memref<9x256xf32, #tpu.memory_space<vmem>>, vector<1x256xf32>
    %52 = vector.broadcast %51 : vector<1x256xf32> to vector<4x256xf32>
    %53 = arith.mulf %50, %52 : vector<4x256xf32>
    %54 = tpu.concatenate %8, %14, %20, %26, %29, %35, %41, %47, %53 in 0 : vector<4x256xf32>, vector<4x256xf32>, vector<4x256xf32>, vector<4x256xf32>, vector<4x256xf32>, vector<4x256xf32>, vector<4x256xf32>, vector<4x256xf32>, vector<4x256xf32> -> vector<36x256xf32>
    %cst = arith.constant dense<0.000000e+00> : vector<8x256xf32>
    %55 = tpu.matmul %2, %54, %cst {dimension_numbers = #tpu.dot_dimension_numbers<[1], [0], [0], [1], [0, 0, 1, 1], [], []>} : vector<8x36xf32>, vector<36x256xf32>, vector<8x256xf32> -> vector<8x256xf32>
    %c0_14 = arith.constant 0 : index
    %c0_15 = arith.constant 0 : index
    %56 = vector.load %arg4[%c0_14, %c0_15] : memref<8x1xf32, #tpu.memory_space<vmem>>, vector<8x1xf32>
    %57 = vector.broadcast %56 : vector<8x1xf32> to vector<8x256xf32>
    %58 = arith.mulf %55, %57 : vector<8x256xf32>
    %c0_16 = arith.constant 0 : index
    %c0_17 = arith.constant 0 : index
    %59 = vector.load %arg5[%c0_16, %c0_17] : memref<8x1xf32, #tpu.memory_space<vmem>>, vector<8x1xf32>
    %60 = vector.broadcast %59 : vector<8x1xf32> to vector<8x256xf32>
    %61 = arith.addf %58, %60 : vector<8x256xf32>
    %cst_18 = arith.constant 0.000000e+00 : f32
    %62 = vector.broadcast %cst_18 : f32 to vector<8x256xf32>
    %63 = arith.maximumf %61, %62 : vector<8x256xf32>
    %c0_19 = arith.constant 0 : index
    %c0_20 = arith.constant 0 : index
    %64 = vector.load %arg6[%c0_19, %c0_20] : memref<8x72xf32, #tpu.memory_space<vmem>>, vector<8x72xf32>
    %65 = vector.extract_strided_slice %63 {offsets = [0, 239], sizes = [8, 17], strides = [1, 1]} : vector<8x256xf32> to vector<8x17xf32>
    %66 = vector.extract_strided_slice %63 {offsets = [0, 0], sizes = [8, 239], strides = [1, 1]} : vector<8x256xf32> to vector<8x239xf32>
    %67 = tpu.concatenate %65, %66 in 1 : vector<8x17xf32>, vector<8x239xf32> -> vector<8x256xf32>
    %c0_21 = arith.constant 0 : index
    %c0_22 = arith.constant 0 : index
    %68 = vector.load %arg2[%c0_21, %c0_22] : memref<9x256xf32, #tpu.memory_space<vmem>>, vector<1x256xf32>
    %69 = vector.broadcast %68 : vector<1x256xf32> to vector<8x256xf32>
    %70 = arith.mulf %67, %69 : vector<8x256xf32>
    %71 = vector.extract_strided_slice %63 {offsets = [0, 240], sizes = [8, 16], strides = [1, 1]} : vector<8x256xf32> to vector<8x16xf32>
    %72 = vector.extract_strided_slice %63 {offsets = [0, 0], sizes = [8, 240], strides = [1, 1]} : vector<8x256xf32> to vector<8x240xf32>
    %73 = tpu.concatenate %71, %72 in 1 : vector<8x16xf32>, vector<8x240xf32> -> vector<8x256xf32>
    %c1_23 = arith.constant 1 : index
    %c0_24 = arith.constant 0 : index
    %74 = vector.load %arg2[%c1_23, %c0_24] : memref<9x256xf32, #tpu.memory_space<vmem>>, vector<1x256xf32>
    %75 = vector.broadcast %74 : vector<1x256xf32> to vector<8x256xf32>
    %76 = arith.mulf %73, %75 : vector<8x256xf32>
    %77 = vector.extract_strided_slice %63 {offsets = [0, 241], sizes = [8, 15], strides = [1, 1]} : vector<8x256xf32> to vector<8x15xf32>
    %78 = vector.extract_strided_slice %63 {offsets = [0, 0], sizes = [8, 241], strides = [1, 1]} : vector<8x256xf32> to vector<8x241xf32>
    %79 = tpu.concatenate %77, %78 in 1 : vector<8x15xf32>, vector<8x241xf32> -> vector<8x256xf32>
    %c2_25 = arith.constant 2 : index
    %c0_26 = arith.constant 0 : index
    %80 = vector.load %arg2[%c2_25, %c0_26] : memref<9x256xf32, #tpu.memory_space<vmem>>, vector<1x256xf32>
    %81 = vector.broadcast %80 : vector<1x256xf32> to vector<8x256xf32>
    %82 = arith.mulf %79, %81 : vector<8x256xf32>
    %83 = vector.extract_strided_slice %63 {offsets = [0, 255], sizes = [8, 1], strides = [1, 1]} : vector<8x256xf32> to vector<8x1xf32>
    %84 = vector.extract_strided_slice %63 {offsets = [0, 0], sizes = [8, 255], strides = [1, 1]} : vector<8x256xf32> to vector<8x255xf32>
    %85 = tpu.concatenate %83, %84 in 1 : vector<8x1xf32>, vector<8x255xf32> -> vector<8x256xf32>
    %c3_27 = arith.constant 3 : index
    %c0_28 = arith.constant 0 : index
    %86 = vector.load %arg2[%c3_27, %c0_28] : memref<9x256xf32, #tpu.memory_space<vmem>>, vector<1x256xf32>
    %87 = vector.broadcast %86 : vector<1x256xf32> to vector<8x256xf32>
    %88 = arith.mulf %85, %87 : vector<8x256xf32>
    %c4_29 = arith.constant 4 : index
    %c0_30 = arith.constant 0 : index
    %89 = vector.load %arg2[%c4_29, %c0_30] : memref<9x256xf32, #tpu.memory_space<vmem>>, vector<1x256xf32>
    %90 = vector.broadcast %89 : vector<1x256xf32> to vector<8x256xf32>
    %91 = arith.mulf %63, %90 : vector<8x256xf32>
    %92 = vector.extract_strided_slice %63 {offsets = [0, 1], sizes = [8, 255], strides = [1, 1]} : vector<8x256xf32> to vector<8x255xf32>
    %93 = vector.extract_strided_slice %63 {offsets = [0, 0], sizes = [8, 1], strides = [1, 1]} : vector<8x256xf32> to vector<8x1xf32>
    %94 = tpu.concatenate %92, %93 in 1 : vector<8x255xf32>, vector<8x1xf32> -> vector<8x256xf32>
    %c5_31 = arith.constant 5 : index
    %c0_32 = arith.constant 0 : index
    %95 = vector.load %arg2[%c5_31, %c0_32] : memref<9x256xf32, #tpu.memory_space<vmem>>, vector<1x256xf32>
    %96 = vector.broadcast %95 : vector<1x256xf32> to vector<8x256xf32>
    %97 = arith.mulf %94, %96 : vector<8x256xf32>
    %98 = vector.extract_strided_slice %63 {offsets = [0, 15], sizes = [8, 241], strides = [1, 1]} : vector<8x256xf32> to vector<8x241xf32>
    %99 = vector.extract_strided_slice %63 {offsets = [0, 0], sizes = [8, 15], strides = [1, 1]} : vector<8x256xf32> to vector<8x15xf32>
    %100 = tpu.concatenate %98, %99 in 1 : vector<8x241xf32>, vector<8x15xf32> -> vector<8x256xf32>
    %c6_33 = arith.constant 6 : index
    %c0_34 = arith.constant 0 : index
    %101 = vector.load %arg2[%c6_33, %c0_34] : memref<9x256xf32, #tpu.memory_space<vmem>>, vector<1x256xf32>
    %102 = vector.broadcast %101 : vector<1x256xf32> to vector<8x256xf32>
    %103 = arith.mulf %100, %102 : vector<8x256xf32>
    %104 = vector.extract_strided_slice %63 {offsets = [0, 16], sizes = [8, 240], strides = [1, 1]} : vector<8x256xf32> to vector<8x240xf32>
    %105 = vector.extract_strided_slice %63 {offsets = [0, 0], sizes = [8, 16], strides = [1, 1]} : vector<8x256xf32> to vector<8x16xf32>
    %106 = tpu.concatenate %104, %105 in 1 : vector<8x240xf32>, vector<8x16xf32> -> vector<8x256xf32>
    %c7_35 = arith.constant 7 : index
    %c0_36 = arith.constant 0 : index
    %107 = vector.load %arg2[%c7_35, %c0_36] : memref<9x256xf32, #tpu.memory_space<vmem>>, vector<1x256xf32>
    %108 = vector.broadcast %107 : vector<1x256xf32> to vector<8x256xf32>
    %109 = arith.mulf %106, %108 : vector<8x256xf32>
    %110 = vector.extract_strided_slice %63 {offsets = [0, 17], sizes = [8, 239], strides = [1, 1]} : vector<8x256xf32> to vector<8x239xf32>
    %111 = vector.extract_strided_slice %63 {offsets = [0, 0], sizes = [8, 17], strides = [1, 1]} : vector<8x256xf32> to vector<8x17xf32>
    %112 = tpu.concatenate %110, %111 in 1 : vector<8x239xf32>, vector<8x17xf32> -> vector<8x256xf32>
    %c8_37 = arith.constant 8 : index
    %c0_38 = arith.constant 0 : index
    %113 = vector.load %arg2[%c8_37, %c0_38] : memref<9x256xf32, #tpu.memory_space<vmem>>, vector<1x256xf32>
    %114 = vector.broadcast %113 : vector<1x256xf32> to vector<8x256xf32>
    %115 = arith.mulf %112, %114 : vector<8x256xf32>
    %116 = tpu.concatenate %70, %76, %82, %88, %91, %97, %103, %109, %115 in 0 : vector<8x256xf32>, vector<8x256xf32>, vector<8x256xf32>, vector<8x256xf32>, vector<8x256xf32>, vector<8x256xf32>, vector<8x256xf32>, vector<8x256xf32>, vector<8x256xf32> -> vector<72x256xf32>
    %cst_39 = arith.constant dense<0.000000e+00> : vector<8x256xf32>
    %117 = tpu.matmul %64, %116, %cst_39 {dimension_numbers = #tpu.dot_dimension_numbers<[1], [0], [0], [1], [0, 0, 1, 1], [], []>} : vector<8x72xf32>, vector<72x256xf32>, vector<8x256xf32> -> vector<8x256xf32>
    %c0_40 = arith.constant 0 : index
    %c0_41 = arith.constant 0 : index
    %118 = vector.load %arg7[%c0_40, %c0_41] : memref<8x1xf32, #tpu.memory_space<vmem>>, vector<8x1xf32>
    %119 = vector.broadcast %118 : vector<8x1xf32> to vector<8x256xf32>
    %120 = arith.mulf %117, %119 : vector<8x256xf32>
    %c0_42 = arith.constant 0 : index
    %c0_43 = arith.constant 0 : index
    %121 = vector.load %arg8[%c0_42, %c0_43] : memref<8x1xf32, #tpu.memory_space<vmem>>, vector<8x1xf32>
    %122 = vector.broadcast %121 : vector<8x1xf32> to vector<8x256xf32>
    %123 = arith.addf %120, %122 : vector<8x256xf32>
    %cst_44 = arith.constant 0.000000e+00 : f32
    %124 = vector.broadcast %cst_44 : f32 to vector<8x256xf32>
    %125 = arith.maximumf %123, %124 : vector<8x256xf32>
    %c0_45 = arith.constant 0 : index
    %c0_46 = arith.constant 0 : index
    %126 = vector.load %arg9[%c0_45, %c0_46] : memref<8x4xf32, #tpu.memory_space<vmem>>, vector<8x4xf32>
    %cst_47 = arith.constant dense<0.000000e+00> : vector<8x256xf32>
    %127 = tpu.matmul %126, %1, %cst_47 {dimension_numbers = #tpu.dot_dimension_numbers<[1], [0], [0], [1], [0, 0, 1, 1], [], []>} : vector<8x4xf32>, vector<4x256xf32>, vector<8x256xf32> -> vector<8x256xf32>
    %c0_48 = arith.constant 0 : index
    %c0_49 = arith.constant 0 : index
    %128 = vector.load %arg10[%c0_48, %c0_49] : memref<8x1xf32, #tpu.memory_space<vmem>>, vector<8x1xf32>
    %129 = vector.broadcast %128 : vector<8x1xf32> to vector<8x256xf32>
    %130 = arith.mulf %127, %129 : vector<8x256xf32>
    %c0_50 = arith.constant 0 : index
    %c0_51 = arith.constant 0 : index
    %131 = vector.load %arg11[%c0_50, %c0_51] : memref<8x1xf32, #tpu.memory_space<vmem>>, vector<8x1xf32>
    %132 = vector.broadcast %131 : vector<8x1xf32> to vector<8x256xf32>
    %133 = arith.addf %130, %132 : vector<8x256xf32>
    %134 = arith.addf %125, %133 : vector<8x256xf32>
    %c0_52 = arith.constant 0 : index
    %c0_53 = arith.constant 0 : index
    %c0_54 = arith.constant 0 : index
    %135 = vector.load %arg12[%c0_52, %c0_53, %c0_54] : memref<1x8x256xf32, #tpu.memory_space<vmem>>, vector<1x8x256xf32>
    %136 = vector.shape_cast %135 : vector<1x8x256xf32> to vector<8x256xf32>
    %137 = vector.shape_cast %134 : vector<8x256xf32> to vector<1x8x256xf32>
    tpu.vector_store %arg12[%c0_52, %c0_53, %c0_54], %137 {strides = array<i32>} : memref<1x8x256xf32, #tpu.memory_space<vmem>>, vector<1x8x256xf32>,
    return
  }
  func.func @transform_0(%arg0: i32) -> (i32, i32, i32) {
    %c0_i32 = arith.constant 0 : i32
    %c0_i32_0 = arith.constant 0 : i32
    %c0_i32_1 = arith.constant 0 : i32
    return %arg0, %c0_i32, %c0_i32_0 : i32, i32, i32
  }
  func.func @transform_1(%arg0: i32) -> (i32, i32) {
    %c0_i32 = arith.constant 0 : i32
    %c0_i32_0 = arith.constant 0 : i32
    %c0_i32_1 = arith.constant 0 : i32
    return %c0_i32, %c0_i32_0 : i32, i32
  }
  func.func @transform_2(%arg0: i32) -> (i32, i32) {
    %c0_i32 = arith.constant 0 : i32
    %c0_i32_0 = arith.constant 0 : i32
    %c0_i32_1 = arith.constant 0 : i32
    return %c0_i32, %c0_i32_0 : i32, i32
  }
  func.func @transform_3(%arg0: i32) -> (i32, i32) {
    %c0_i32 = arith.constant 0 : i32
    %c0_i32_0 = arith.constant 0 : i32
    %c0_i32_1 = arith.constant 0 : i32
    return %c0_i32, %c0_i32_0 : i32, i32
  }
  func.func @transform_4(%arg0: i32) -> (i32, i32) {
    %c0_i32 = arith.constant 0 : i32
    %c0_i32_0 = arith.constant 0 : i32
    %c0_i32_1 = arith.constant 0 : i32
    return %c0_i32, %c0_i32_0 : i32, i32
  }
  func.func @transform_5(%arg0: i32) -> (i32, i32) {
    %c0_i32 = arith.constant 0 : i32
    %c0_i32_0 = arith.constant 0 : i32
    %c0_i32_1 = arith.constant 0 : i32
    return %c0_i32, %c0_i32_0 : i32, i32
  }
  func.func @transform_6(%arg0: i32) -> (i32, i32) {
    %c0_i32 = arith.constant 0 : i32
    %c0_i32_0 = arith.constant 0 : i32
    %c0_i32_1 = arith.constant 0 : i32
    return %c0_i32, %c0_i32_0 : i32, i32
  }
  func.func @transform_7(%arg0: i32) -> (i32, i32) {
    %c0_i32 = arith.constant 0 : i32
    %c0_i32_0 = arith.constant 0 : i32
    %c0_i32_1 = arith.constant 0 : i32
    return %c0_i32, %c0_i32_0 : i32, i32
  }
  func.func @transform_8(%arg0: i32) -> (i32, i32) {
    %c0_i32 = arith.constant 0 : i32
    %c0_i32_0 = arith.constant 0 : i32
    %c0_i32_1 = arith.constant 0 : i32
    return %c0_i32, %c0_i32_0 : i32, i32
  }
  func.func @transform_9(%arg0: i32) -> (i32, i32) {
    %c0_i32 = arith.constant 0 : i32
    %c0_i32_0 = arith.constant 0 : i32
    %c0_i32_1 = arith.constant 0 : i32
    return %c0_i32, %c0_i32_0 : i32, i32
  }
  func.func @transform_10(%arg0: i32) -> (i32, i32) {
    %c0_i32 = arith.constant 0 : i32
    %c0_i32_0 = arith.constant 0 : i32
    %c0_i32_1 = arith.constant 0 : i32
    return %c0_i32, %c0_i32_0 : i32, i32
  }
  func.func @transform_11(%arg0: i32) -> (i32, i32, i32) {
    %c0_i32 = arith.constant 0 : i32
    %c0_i32_0 = arith.constant 0 : i32
    %c0_i32_1 = arith.constant 0 : i32
    return %arg0, %c0_i32, %c0_i32_0 : i32, i32, i32
  }
}

</mosaic_0001>

<llo_original>
// kernel: inconv_forward.1
$region0: #{inconv_forward.1}
  #allocation0 [shape = 'u32[]', space=smem, size = 0x4, offset = 0x4, fixed_abs, tag = 'smem constant byte address 0x4 - core index']
  #allocation1 [shape = 'u32[144,128]{1,0:T(1,128)}', space=vmem, size = 0x12000, scoped, tag = 'internal scratch']
  %s0 = inlined_call_operand.vmem [shape: f32[2,4,256], index: 0, kind: input, shape index: {}]
  %s1 = inlined_call_operand.vmem [shape: f32[9,256], index: 1, kind: input, shape index: {}]
  %s2 = inlined_call_operand.vmem [shape: f32[8,36], index: 2, kind: input, shape index: {}]
  %s3 = inlined_call_operand.vmem [shape: f32[8,1], index: 3, kind: input, shape index: {}]
  %s4 = inlined_call_operand.vmem [shape: f32[8,1], index: 4, kind: input, shape index: {}]
  %s5 = inlined_call_operand.vmem [shape: f32[8,72], index: 5, kind: input, shape index: {}]
  %s6 = inlined_call_operand.vmem [shape: f32[8,1], index: 6, kind: input, shape index: {}]
  %s7 = inlined_call_operand.vmem [shape: f32[8,1], index: 7, kind: input, shape index: {}]
  %s8 = inlined_call_operand.vmem [shape: f32[8,4], index: 8, kind: input, shape index: {}]
  %s9 = inlined_call_operand.vmem [shape: f32[8,1], index: 9, kind: input, shape index: {}]
  %s10 = inlined_call_operand.vmem [shape: f32[8,1], index: 10, kind: input, shape index: {}]
  %s11 = inlined_call_operand.vmem [shape: f32[2,8,256], index: 11, kind: output, shape index: {}]
  %s12 = sld [smem:[#allocation0]]
  $region77: #{inconv_forward.1} parent=0
    _
  %s14 = ssub.s32 1, %s12
  %s15 = scalar_select 0, %s14, %s12
  loop: start=0, step=1, limit=4
  $region2: #{inconv_forward.1} parent=0 // loop_pre_header
    _
  $region3: #{inconv_forward.1} parent=0 // loop_header
    %s17 = sphi 0, %s21
    %p18 = scmp.ge.s32.totalorder %s17, 4
    %s27 = sphi 0, %s29
    %s30 = sphi 0, %s27
    %s31 = sphi 0, %s30
    %s47 = sphi 0, %s31
    %s51 = sphi 0, %s51
    %s53 = sphi 0, %s51
    %s54 = sphi 0, %s53
    %s68 = sphi 0, %s54
    %s72 = sphi 0, %s72
    %s74 = sphi 0, %s72
    %s75 = sphi 0, %s74
    %s89 = sphi 0, %s75
    %s93 = sphi 0, %s93
    %s95 = sphi 0, %s93
    %s96 = sphi 0, %s95
    %s110 = sphi 0, %s96
    %s114 = sphi 0, %s114
    %s116 = sphi 0, %s114
    %s117 = sphi 0, %s116
    %s131 = sphi 0, %s117
    %s135 = sphi 0, %s135
    %s137 = sphi 0, %s135
    %s138 = sphi 0, %s137
    %s152 = sphi 0, %s138
    %s156 = sphi 0, %s156
    %s158 = sphi 0, %s156
    %s159 = sphi 0, %s158
    %s173 = sphi 0, %s159
    %s177 = sphi 0, %s177
    %s179 = sphi 0, %s177
    %s180 = sphi 0, %s179
    %s194 = sphi 0, %s180
    %s198 = sphi 0, %s198
    %s200 = sphi 0, %s198
    %s201 = sphi 0, %s200
    %s215 = sphi 0, %s201
    %s219 = sphi 0, %s219
    %s221 = sphi 0, %s219
    %s222 = sphi 0, %s221
    %s236 = sphi 0, %s222
    %s240 = sphi 0, %s240
    %s242 = sphi 0, %s240
    %s243 = sphi 0, %s242
    %s257 = sphi 0, %s243
    %s263 = sphi 0, %s265
    %s266 = sphi 0, %s263
    %s267 = sphi 0, %s266
    %s283 = sphi 0, %s267
  $region4: #{inconv_forward.1} parent=0 // loop_header_branch
    %20 = sbr.rel (%p18) target = $region8
  $region5: #{inconv_forward.1} parent=0 // loop_body
    %s22 = ssub.s32 %s17, 1
    %s23 = ssub.s32 %s17, 2
    %s24 = sadd.s32 %s17, 1
    %s25 = ssub.s32 %s17, %s24
    %p26 = scmp.eq.s32.totalorder %s25, 0
    %s28 = sadd.s32 %s27, 1
    %s29 = scalar_select %p26, %s27, %s28
    %p32 = pneg %p26
    %p33 = scmp.eq.s32.totalorder %s17, 1
    %p34 = por %p32, %p33
    %p35 = scmp.ne.s32.totalorder %s27, %s30
    %p36 = scmp.eq.s32.totalorder %s17, 0
    %p37 = por %p35, %p36
    %p38 = scmp.ne.s32.totalorder %s27, %s30
    %p39 = scmp.eq.s32.totalorder %s22, 1
    %p40 = por %p38, %p39
    %p41 = scmp.ne.s32.totalorder %s30, %s31
    %p42 = scmp.eq.s32.totalorder %s22, 0
    %p43 = por %p41, %p42
    %p44 = scmp.ne.s32.totalorder %s30, %s31
    %p45 = scmp.eq.s32.totalorder %s23, 1
    %p46 = por %p44, %p45
    %p48 = scmp.ne.s32.totalorder %s31, %s47
    %p49 = scmp.eq.s32.totalorder %s23, 0
    %p50 = por %p48, %p49
    %s52 = sadd.s32 %s51, 1
    %p55 = scmp.eq.s32.totalorder %s17, 1
    %p56 = scmp.ne.s32.totalorder %s51, %s53
    %p57 = scmp.eq.s32.totalorder %s17, 0
    %p58 = por %p56, %p57
    %p59 = scmp.ne.s32.totalorder %s51, %s53
    %p60 = scmp.eq.s32.totalorder %s22, 1
    %p61 = por %p59, %p60
    %p62 = scmp.ne.s32.totalorder %s53, %s54
    %p63 = scmp.eq.s32.totalorder %s22, 0
    %p64 = por %p62, %p63
    %p65 = scmp.ne.s32.totalorder %s53, %s54
    %p66 = scmp.eq.s32.totalorder %s23, 1
    %p67 = por %p65, %p66
    %p69 = scmp.ne.s32.totalorder %s54, %s68
    %p70 = scmp.eq.s32.totalorder %s23, 0
    %p71 = por %p69, %p70
    %s73 = sadd.s32 %s72, 1
    %p76 = scmp.eq.s32.totalorder %s17, 1
    %p77 = scmp.ne.s32.totalorder %s72, %s74
    %p78 = scmp.eq.s32.totalorder %s17, 0
    %p79 = por %p77, %p78
    %p80 = scmp.ne.s32.totalorder %s72, %s74
    %p81 = scmp.eq.s32.totalorder %s22, 1
    %p82 = por %p80, %p81
    %p83 = scmp.ne.s32.totalorder %s74, %s75
    %p84 = scmp.eq.s32.totalorder %s22, 0
    %p85 = por %p83, %p84
    %p86 = scmp.ne.s32.totalorder %s74, %s75
    %p87 = scmp.eq.s32.totalorder %s23, 1
    %p88 = por %p86, %p87
    %p90 = scmp.ne.s32.totalorder %s75, %s89
    %p91 = scmp.eq.s32.totalorder %s23, 0
    %p92 = por %p90, %p91
    %s94 = sadd.s32 %s93, 1
    %p97 = scmp.eq.s32.totalorder %s17, 1
    %p98 = scmp.ne.s32.totalorder %s93, %s95
    %p99 = scmp.eq.s32.totalorder %s17, 0
    %p100 = por %p98, %p99
    %p101 = scmp.ne.s32.totalorder %s93, %s95
    %p102 = scmp.eq.s32.totalorder %s22, 1
    %p103 = por %p101, %p102
    %p104 = scmp.ne.s32.totalorder %s95, %s96
    %p105 = scmp.eq.s32.totalorder %s22, 0
    %p106 = por %p104, %p105
    %p107 = scmp.ne.s32.totalorder %s95, %s96
    %p108 = scmp.eq.s32.totalorder %s23, 1
    %p109 = por %p107, %p108
    %p111 = scmp.ne.s32.totalorder %s96, %s110
    %p112 = scmp.eq.s32.totalorder %s23, 0
    %p113 = por %p111, %p112
    %s115 = sadd.s32 %s114, 1
    %p118 = scmp.eq.s32.totalorder %s17, 1
    %p119 = scmp.ne.s32.totalorder %s114, %s116
    %p120 = scmp.eq.s32.totalorder %s17, 0
    %p121 = por %p119, %p120
    %p122 = scmp.ne.s32.totalorder %s114, %s116
    %p123 = scmp.eq.s32.totalorder %s22, 1
    %p124 = por %p122, %p123
    %p125 = scmp.ne.s32.totalorder %s116, %s117
    %p126 = scmp.eq.s32.totalorder %s22, 0
    %p127 = por %p125, %p126
    %p128 = scmp.ne.s32.totalorder %s116, %s117
    %p129 = scmp.eq.s32.totalorder %s23, 1
    %p130 = por %p128, %p129
    %p132 = scmp.ne.s32.totalorder %s117, %s131
    %p133 = scmp.eq.s32.totalorder %s23, 0
    %p134 = por %p132, %p133
    %s136 = sadd.s32 %s135, 1
    %p139 = scmp.eq.s32.totalorder %s17, 1
    %p140 = scmp.ne.s32.totalorder %s135, %s137
    %p141 = scmp.eq.s32.totalorder %s17, 0
    %p142 = por %p140, %p141
    %p143 = scmp.ne.s32.totalorder %s135, %s137
    %p144 = scmp.eq.s32.totalorder %s22, 1
    %p145 = por %p143, %p144
    %p146 = scmp.ne.s32.totalorder %s137, %s138
    %p147 = scmp.eq.s32.totalorder %s22, 0
    %p148 = por %p146, %p147
    %p149 = scmp.ne.s32.totalorder %s137, %s138
    %p150 = scmp.eq.s32.totalorder %s23, 1
    %p151 = por %p149, %p150
    %p153 = scmp.ne.s32.totalorder %s138, %s152
    %p154 = scmp.eq.s32.totalorder %s23, 0
    %p155 = por %p153, %p154
    %s157 = sadd.s32 %s156, 1
    %p160 = scmp.eq.s32.totalorder %s17, 1
    %p161 = scmp.ne.s32.totalorder %s156, %s158
    %p162 = scmp.eq.s32.totalorder %s17, 0
    %p163 = por %p161, %p162
    %p164 = scmp.ne.s32.totalorder %s156, %s158
    %p165 = scmp.eq.s32.totalorder %s22, 1
    %p166 = por %p164, %p165
    %p167 = scmp.ne.s32.totalorder %s158, %s159
    %p168 = scmp.eq.s32.totalorder %s22, 0
    %p169 = por %p167, %p168
    %p170 = scmp.ne.s32.totalorder %s158, %s159
    %p171 = scmp.eq.s32.totalorder %s23, 1
    %p172 = por %p170, %p171
    %p174 = scmp.ne.s32.totalorder %s159, %s173
    %p175 = scmp.eq.s32.totalorder %s23, 0
    %p176 = por %p174, %p175
    %s178 = sadd.s32 %s177, 1
    %p181 = scmp.eq.s32.totalorder %s17, 1
    %p182 = scmp.ne.s32.totalorder %s177, %s179
    %p183 = scmp.eq.s32.totalorder %s17, 0
    %p184 = por %p182, %p183
    %p185 = scmp.ne.s32.totalorder %s177, %s179
    %p186 = scmp.eq.s32.totalorder %s22, 1
    %p187 = por %p185, %p186
    %p188 = scmp.ne.s32.totalorder %s179, %s180
    %p189 = scmp.eq.s32.totalorder %s22, 0
    %p190 = por %p188, %p189
    %p191 = scmp.ne.s32.totalorder %s179, %s180
    %p192 = scmp.eq.s32.totalorder %s23, 1
    %p193 = por %p191, %p192
    %p195 = scmp.ne.s32.totalorder %s180, %s194
    %p196 = scmp.eq.s32.totalorder %s23, 0
    %p197 = por %p195, %p196
    %s199 = sadd.s32 %s198, 1
    %p202 = scmp.eq.s32.totalorder %s17, 1
    %p203 = scmp.ne.s32.totalorder %s198, %s200
    %p204 = scmp.eq.s32.totalorder %s17, 0
    %p205 = por %p203, %p204
    %p206 = scmp.ne.s32.totalorder %s198, %s200
    %p207 = scmp.eq.s32.totalorder %s22, 1
    %p208 = por %p206, %p207
    %p209 = scmp.ne.s32.totalorder %s200, %s201
    %p210 = scmp.eq.s32.totalorder %s22, 0
    %p211 = por %p209, %p210
    %p212 = scmp.ne.s32.totalorder %s200, %s201
    %p213 = scmp.eq.s32.totalorder %s23, 1
    %p214 = por %p212, %p213
    %p216 = scmp.ne.s32.totalorder %s201, %s215
    %p217 = scmp.eq.s32.totalorder %s23, 0
    %p218 = por %p216, %p217
    %s220 = sadd.s32 %s219, 1
    %p223 = scmp.eq.s32.totalorder %s17, 1
    %p224 = scmp.ne.s32.totalorder %s219, %s221
    %p225 = scmp.eq.s32.totalorder %s17, 0
    %p226 = por %p224, %p225
    %p227 = scmp.ne.s32.totalorder %s219, %s221
    %p228 = scmp.eq.s32.totalorder %s22, 1
    %p229 = por %p227, %p228
    %p230 = scmp.ne.s32.totalorder %s221, %s222
    %p231 = scmp.eq.s32.totalorder %s22, 0
    %p232 = por %p230, %p231
    %p233 = scmp.ne.s32.totalorder %s221, %s222
    %p234 = scmp.eq.s32.totalorder %s23, 1
    %p235 = por %p233, %p234
    %p237 = scmp.ne.s32.totalorder %s222, %s236
    %p238 = scmp.eq.s32.totalorder %s23, 0
    %p239 = por %p237, %p238
    %s241 = sadd.s32 %s240, 1
    %p244 = scmp.eq.s32.totalorder %s17, 1
    %p245 = scmp.ne.s32.totalorder %s240, %s242
    %p246 = scmp.eq.s32.totalorder %s17, 0
    %p247 = por %p245, %p246
    %p248 = scmp.ne.s32.totalorder %s240, %s242
    %p249 = scmp.eq.s32.totalorder %s22, 1
    %p250 = por %p248, %p249
    %p251 = scmp.ne.s32.totalorder %s242, %s243
    %p252 = scmp.eq.s32.totalorder %s22, 0
    %p253 = por %p251, %p252
    %p254 = scmp.ne.s32.totalorder %s242, %s243
    %p255 = scmp.eq.s32.totalorder %s23, 1
    %p256 = por %p254, %p255
    %p258 = scmp.ne.s32.totalorder %s243, %s257
    %p259 = scmp.eq.s32.totalorder %s23, 0
    %p260 = por %p258, %p259
    %s261 = ssub.s32 %s17, %s24
    %p262 = scmp.eq.s32.totalorder %s261, 0
    %s264 = sadd.s32 %s263, 1
    %s265 = scalar_select %p262, %s263, %s264
    %p268 = pneg %p262
    %p269 = scmp.eq.s32.totalorder %s17, 1
    %p270 = por %p268, %p269
    %p271 = scmp.ne.s32.totalorder %s263, %s266
    %p272 = scmp.eq.s32.totalorder %s17, 0
    %p273 = por %p271, %p272
    %p274 = scmp.ne.s32.totalorder %s263, %s266
    %p275 = scmp.eq.s32.totalorder %s22, 1
    %p276 = por %p274, %p275
    %p277 = scmp.ne.s32.totalorder %s266, %s267
    %p278 = scmp.eq.s32.totalorder %s22, 0
    %p279 = por %p277, %p278
    %p280 = scmp.ne.s32.totalorder %s266, %s267
    %p281 = scmp.eq.s32.totalorder %s23, 1
    %p282 = por %p280, %p281
    %p284 = scmp.ne.s32.totalorder %s267, %s283
    %p285 = scmp.eq.s32.totalorder %s23, 0
    %p286 = por %p284, %p285
    %p287 = scmp.le.s32.totalorder 1, %s17
    %p288 = scmp.lt.s32.totalorder %s17, 3
    %p289 = pnand %p287, %p288
    %p290 = pneg %p289
    // Predicated region
    $region9: #{inconv_forward.1} parent=5 // pred_check
      _
    $region10: #{inconv_forward.1} parent=5 // pred_check_branch
      %292 = sbr.rel (%p289) target = $region12
    $region11: #{inconv_forward.1} parent=5 // pred_region
      %s293 = ssub.s32 %s17, 1
      // Predicated region
      $region13: #{inconv_forward.1} parent=11 // pred_check
        %p294 = pneg %p64
      $region14: #{inconv_forward.1} parent=11 // pred_check_branch
        %296 = sbr.rel (%p294) target = $region16
      $region15: #{inconv_forward.1} parent=11 // pred_region
        _
      $region16: #{inconv_forward.1} parent=11 // pred_fallthru
        _
      // Predicated region
      $region17: #{inconv_forward.1} parent=11 // pred_check
        %p297 = pneg %p85
      $region18: #{inconv_forward.1} parent=11 // pred_check_branch
        %299 = sbr.rel (%p297) target = $region20
      $region19: #{inconv_forward.1} parent=11 // pred_region
        _
      $region20: #{inconv_forward.1} parent=11 // pred_fallthru
        _
      // Predicated region
      $region21: #{inconv_forward.1} parent=11 // pred_check
        %p300 = pneg %p106
      $region22: #{inconv_forward.1} parent=11 // pred_check_branch
        %302 = sbr.rel (%p300) target = $region24
      $region23: #{inconv_forward.1} parent=11 // pred_region
        _
      $region24: #{inconv_forward.1} parent=11 // pred_fallthru
        _
      // Predicated region
      $region25: #{inconv_forward.1} parent=11 // pred_check
        %p303 = pneg %p127
      $region26: #{inconv_forward.1} parent=11 // pred_check_branch
        %305 = sbr.rel (%p303) target = $region28
      $region27: #{inconv_forward.1} parent=11 // pred_region
        _
      $region28: #{inconv_forward.1} parent=11 // pred_fallthru
        _
      // Predicated region
      $region29: #{inconv_forward.1} parent=11 // pred_check
        %p306 = pneg %p148
      $region30: #{inconv_forward.1} parent=11 // pred_check_branch
        %308 = sbr.rel (%p306) target = $region32
      $region31: #{inconv_forward.1} parent=11 // pred_region
        _
      $region32: #{inconv_forward.1} parent=11 // pred_fallthru
        _
      // Predicated region
      $region33: #{inconv_forward.1} parent=11 // pred_check
        %p309 = pneg %p169
      $region34: #{inconv_forward.1} parent=11 // pred_check_branch
        %311 = sbr.rel (%p309) target = $region36
      $region35: #{inconv_forward.1} parent=11 // pred_region
        _
      $region36: #{inconv_forward.1} parent=11 // pred_fallthru
        _
      // Predicated region
      $region37: #{inconv_forward.1} parent=11 // pred_check
        %p312 = pneg %p190
      $region38: #{inconv_forward.1} parent=11 // pred_check_branch
        %314 = sbr.rel (%p312) target = $region40
      $region39: #{inconv_forward.1} parent=11 // pred_region
        _
      $region40: #{inconv_forward.1} parent=11 // pred_fallthru
        _
      // Predicated region
      $region41: #{inconv_forward.1} parent=11 // pred_check
        %p315 = pneg %p211
      $region42: #{inconv_forward.1} parent=11 // pred_check_branch
        %317 = sbr.rel (%p315) target = $region44
      $region43: #{inconv_forward.1} parent=11 // pred_region
        _
      $region44: #{inconv_forward.1} parent=11 // pred_fallthru
        _
      // Predicated region
      $region45: #{inconv_forward.1} parent=11 // pred_check
        %p318 = pneg %p232
      $region46: #{inconv_forward.1} parent=11 // pred_check_branch
        %320 = sbr.rel (%p318) target = $region48
      $region47: #{inconv_forward.1} parent=11 // pred_region
        _
      $region48: #{inconv_forward.1} parent=11 // pred_fallthru
        _
      // Predicated region
      $region49: #{inconv_forward.1} parent=11 // pred_check
        %p321 = pneg %p253
      $region50: #{inconv_forward.1} parent=11 // pred_check_branch
        %323 = sbr.rel (%p321) target = $region52
      $region51: #{inconv_forward.1} parent=11 // pred_region
        _
      $region52: #{inconv_forward.1} parent=11 // pred_fallthru
        _
    $region12: #{inconv_forward.1} parent=5 // pred_fallthru
      _
    %p324 = scmp.lt.s32.totalorder %s17, 2
    // Predicated region
    $region53: #{inconv_forward.1} parent=5 // pred_check
      %p325 = pneg %p324
    $region54: #{inconv_forward.1} parent=5 // pred_check_branch
      %327 = sbr.rel (%p325) target = $region56
    $region55: #{inconv_forward.1} parent=5 // pred_region
      // Predicated region
      $region57: #{inconv_forward.1} parent=55 // pred_check
        %p328 = pneg %p37
      $region58: #{inconv_forward.1} parent=55 // pred_check_branch
        %330 = sbr.rel (%p328) target = $region60
      $region59: #{inconv_forward.1} parent=55 // pred_region
        %p331 = scmp.lt.s32.totalorder %s17, 1
        %s332 = scalar_select %p331, %s17, 1
        %s333 = smul.addr %s332, 2
        %s334 = smul.addr %s333, 4
        %s335 = scalar_lea.vmem %s0, %s334
      $region60: #{inconv_forward.1} parent=55 // pred_fallthru
        _
    $region56: #{inconv_forward.1} parent=5 // pred_fallthru
      _
    %p336 = scmp.le.s32.totalorder 1, %s17
    %p337 = scmp.lt.s32.totalorder %s17, 3
    %p338 = pnand %p336, %p337
    %p339 = pneg %p338
    // Predicated region
    $region61: #{inconv_forward.1} parent=5 // pred_check
      _
    $region62: #{inconv_forward.1} parent=5 // pred_check_branch
      %341 = sbr.rel (%p338) target = $region64
    $region63: #{inconv_forward.1} parent=5 // pred_region
      %s342 = ssub.s32 %s17, 1
      %p343 = scmp.lt.s32.totalorder %s22, 1
      %s344 = scalar_select %p343, %s22, 1
      %s345 = smul.addr %s344, 2
      %s346 = smul.addr %s345, 4
      %s347 = scalar_lea.vmem %s0, %s346
      %p348 = pneg %p43
      %p349 = pneg %p40
      %p350 = pneg %p64
      %p351 = pneg %p61
      %p352 = pneg %p85
      %p353 = pneg %p82
      %p354 = pneg %p106
      %p355 = pneg %p103
      %p356 = pneg %p127
      %p357 = pneg %p124
      %p358 = pneg %p148
      %p359 = pneg %p145
      %p360 = pneg %p169
      %p361 = pneg %p166
      %p362 = pneg %p190
      %p363 = pneg %p187
      %p364 = pneg %p211
      %p365 = pneg %p208
      %p366 = pneg %p232
      %p367 = pneg %p229
      %p368 = pneg %p253
      %p369 = pneg %p250
      %p370 = pneg %p279
      %p371 = pneg %p276
      %p372 = scmp.lt.s32.totalorder %s22, 1
      %s373 = scalar_select %p372, %s22, 1
      %s374 = smul.addr %s373, 2
      %s375 = smul.addr %s374, 8
      %s376 = scalar_lea.vmem %s11, %s375
      %p377 = scmp.lt.s32.totalorder %s22, 1
      %s378 = scalar_select %p377, %s22, 1
      %s379 = smul.addr %s378, 2
      %s380 = smul.addr %s379, 4
      %s381 = scalar_lea.vmem %s0, %s380
      %p382 = scmp.lt.s32.totalorder %s22, 1
      %s383 = scalar_select %p382, %s22, 1
      %s384 = smul.addr %s383, 2
      %s385 = smul.addr %s384, 8
      %s386 = scalar_lea.vmem %s11, %s385
      %v387 = vld [vmem:[%s381] sm:$0xff]
      %v388 = vld [vmem:[%s2] sm:$0xff]
      %v390 = vcombine.high %v387, %v387
      %391 = vrot.lane.b32.xlu0 %v390, 17
      %v392 = vpop.permute.xlu0 %391
      %394 = vrot.lane.b32.xlu0 %v387, 17
      %v395 = vpop.permute.xlu0 %394
      %vm396 = vcmask 138240
      %v397 = vsel %vm396, %v395, %v392
      %v400 = vsel %vm396, %v392, %v395
      %v401 = vld [vmem:[%s1] ss:$8 sm:$0x3]
      %v403 = vlaneseq
      %v404 = vshrl.u32 %v403, 7
      %v405 = vsub.s32 0, %v404
      %v406 = vrot.slane %v401, %v405
      %v407 = vlaneseq
      %v408 = vshrl.u32 %v407, 7
      %v409 = vsub.s32 1, %v408
      %v410 = vrot.slane %v401, %v409
      %v413 = vmul.f32 %v400, %v406
      %v414 = vmul.f32 %v397, %v410
      %415 = vrot.lane.b32.xlu0 %v390, 16
      %v416 = vpop.permute.xlu0 %415
      %418 = vrot.lane.b32.xlu0 %v387, 16
      %v419 = vpop.permute.xlu0 %418
      %vm420 = vcmask 130048
      %v421 = vsel %vm420, %v419, %v416
      %v424 = vsel %vm420, %v416, %v419
      %s425 = scalar_lea.vmem %s1, 1
      %v426 = vld [vmem:[%s425] ss:$8 sm:$0x3]
      %v428 = vlaneseq
      %v429 = vshrl.u32 %v428, 7
      %v430 = vsub.s32 0, %v429
      %v431 = vrot.slane %v426, %v430
      %v432 = vlaneseq
      %v433 = vshrl.u32 %v432, 7
      %v434 = vsub.s32 1, %v433
      %v435 = vrot.slane %v426, %v434
      %v438 = vmul.f32 %v424, %v431
      %v439 = vmul.f32 %v421, %v435
      %440 = vrot.lane.b32.xlu0 %v390, 15
      %v441 = vpop.permute.xlu0 %440
      %443 = vrot.lane.b32.xlu0 %v387, 15
      %v444 = vpop.permute.xlu0 %443
      %vm445 = vcmask 121856
      %v446 = vsel %vm445, %v444, %v441
      %v449 = vsel %vm445, %v441, %v444
      %s450 = scalar_lea.vmem %s1, 2
      %v451 = vld [vmem:[%s450] ss:$8 sm:$0x3]
      %v453 = vlaneseq
      %v454 = vshrl.u32 %v453, 7
      %v455 = vsub.s32 0, %v454
      %v456 = vrot.slane %v451, %v455
      %v457 = vlaneseq
      %v458 = vshrl.u32 %v457, 7
      %v459 = vsub.s32 1, %v458
      %v460 = vrot.slane %v451, %v459
      %v463 = vmul.f32 %v449, %v456
      %v464 = vmul.f32 %v446, %v460
      %465 = vrot.lane.b32.xlu0 %v390, 1
      %v466 = vpop.permute.xlu0 %465
      %468 = vrot.lane.b32.xlu0 %v387, 1
      %v469 = vpop.permute.xlu0 %468
      %vm470 = vcmask 7168
      %v471 = vsel %vm470, %v469, %v466
      %v474 = vsel %vm470, %v466, %v469
      %s475 = scalar_lea.vmem %s1, 3
      %v476 = vld [vmem:[%s475] ss:$8 sm:$0x3]
      %v478 = vlaneseq
      %v479 = vshrl.u32 %v478, 7
      %v480 = vsub.s32 0, %v479
      %v481 = vrot.slane %v476, %v480
      %v482 = vlaneseq
      %v483 = vshrl.u32 %v482, 7
      %v484 = vsub.s32 1, %v483
      %v485 = vrot.slane %v476, %v484
      %v488 = vmul.f32 %v474, %v481
      %v489 = vmul.f32 %v471, %v485
      %s490 = scalar_lea.vmem %s1, 4
      %v491 = vld [vmem:[%s490] ss:$8 sm:$0x3]
      %v493 = vlaneseq
      %v494 = vshrl.u32 %v493, 7
      %v495 = vsub.s32 0, %v494
      %v496 = vrot.slane %v491, %v495
      %v497 = vlaneseq
      %v498 = vshrl.u32 %v497, 7
      %v499 = vsub.s32 1, %v498
      %v500 = vrot.slane %v491, %v499
      %v501 = vcombine.low %v496, %v500
      %v503 = vmul.f32 %v387, %v501
      %504 = vrot.lane.b32.xlu0 %v387, 127
      %v505 = vpop.permute.xlu0 %504
      %506 = vrot.lane.b32.xlu0 %v390, 127
      %v507 = vpop.permute.xlu0 %506
      %vm508 = vcmask 1039360
      %v509 = vsel %vm508, %v505, %v507
      %v513 = vsel %vm508, %v507, %v505
      %s514 = scalar_lea.vmem %s1, 5
      %v515 = vld [vmem:[%s514] ss:$8 sm:$0x3]
      %v517 = vlaneseq
      %v518 = vshrl.u32 %v517, 7
      %v519 = vsub.s32 0, %v518
      %v520 = vrot.slane %v515, %v519
      %v521 = vlaneseq
      %v522 = vshrl.u32 %v521, 7
      %v523 = vsub.s32 1, %v522
      %v524 = vrot.slane %v515, %v523
      %v527 = vmul.f32 %v509, %v520
      %v528 = vmul.f32 %v513, %v524
      %529 = vrot.lane.b32.xlu0 %v387, 113
      %v530 = vpop.permute.xlu0 %529
      %531 = vrot.lane.b32.xlu0 %v390, 113
      %v532 = vpop.permute.xlu0 %531
      %vm533 = vcmask 924672
      %v534 = vsel %vm533, %v530, %v532
      %v538 = vsel %vm533, %v532, %v530
      %s539 = scalar_lea.vmem %s1, 6
      %v540 = vld [vmem:[%s539] ss:$8 sm:$0x3]
      %v542 = vlaneseq
      %v543 = vshrl.u32 %v542, 7
      %v544 = vsub.s32 0, %v543
      %v545 = vrot.slane %v540, %v544
      %v546 = vlaneseq
      %v547 = vshrl.u32 %v546, 7
      %v548 = vsub.s32 1, %v547
      %v549 = vrot.slane %v540, %v548
      %v552 = vmul.f32 %v534, %v545
      %v553 = vmul.f32 %v538, %v549
      %554 = vrot.lane.b32.xlu0 %v387, 112
      %v555 = vpop.permute.xlu0 %554
      %556 = vrot.lane.b32.xlu0 %v390, 112
      %v557 = vpop.permute.xlu0 %556
      %vm558 = vcmask 916480
      %v559 = vsel %vm558, %v555, %v557
      %v563 = vsel %vm558, %v557, %v555
      %s564 = scalar_lea.vmem %s1, 7
      %v565 = vld [vmem:[%s564] ss:$8 sm:$0x3]
      %v567 = vlaneseq
      %v568 = vshrl.u32 %v567, 7
      %v569 = vsub.s32 0, %v568
      %v570 = vrot.slane %v565, %v569
      %v571 = vlaneseq
      %v572 = vshrl.u32 %v571, 7
      %v573 = vsub.s32 1, %v572
      %v574 = vrot.slane %v565, %v573
      %v577 = vmul.f32 %v559, %v570
      %v578 = vmul.f32 %v563, %v574
      %579 = vrot.lane.b32.xlu0 %v387, 111
      %v580 = vpop.permute.xlu0 %579
      %581 = vrot.lane.b32.xlu0 %v390, 111
      %v582 = vpop.permute.xlu0 %581
      %vm583 = vcmask 908288
      %v584 = vsel %vm583, %v580, %v582
      %v588 = vsel %vm583, %v582, %v580
      %s589 = scalar_lea.vmem %s1, 16
      %v590 = vld [vmem:[%s589] ss:$8 sm:$0x3]
      %v592 = vlaneseq
      %v593 = vshrl.u32 %v592, 7
      %v594 = vsub.s32 0, %v593
      %v595 = vrot.slane %v590, %v594
      %v596 = vlaneseq
      %v597 = vshrl.u32 %v596, 7
      %v598 = vsub.s32 1, %v597
      %v599 = vrot.slane %v590, %v598
      %v602 = vmul.f32 %v584, %v595
      %v603 = vmul.f32 %v588, %v599
      %v606 = vrot.slane %v438, 4
      %v607 = vrot.slane %v439, 4
      %v612 = vrot.slane %v488, 4
      %v613 = vrot.slane %v489, 4
      %v617 = vcombine.high %v503, %v503
      %v621 = vrot.slane %v527, 4
      %v622 = vrot.slane %v528, 4
      %v627 = vrot.slane %v577, 4
      %v628 = vrot.slane %v578, 4
      %vm631 = vcmask 1043456
      %v632 = vsel %vm631, %v413, %v606
      %v633 = vsel %vm631, %v414, %v607
      %v634 = vsel %vm631, %v463, %v612
      %v635 = vsel %vm631, %v464, %v613
      %v636 = vsel %vm631, %v503, %v621
      %v637 = vsel %vm631, %v617, %v622
      %v638 = vsel %vm631, %v552, %v627
      %v639 = vsel %vm631, %v553, %v628
      %vm640 = vcmask 293888
      %v642 = vsel %vm640, %v388, 0
      %v645 = vsel %vm631, %v602, 0
      %v648 = vsel %vm631, %v603, 0
      %650 = vmatprep.subr.mxu0 %v633
      %651 = vmatpush1.msra.mxu0 %v632
      %652 = vmatprep.subr.mxu0 %v635
      %653 = vmatpush1.msra.mxu0 %v634
      %654 = vmatprep.subr.mxu0 %v637
      %655 = vmatpush1.msra.mxu0 %v636
      %656 = vmatprep.subr.mxu0 %v639
      %657 = vmatpush1.msra.mxu0 %v638
      %658 = vmatprep.subr.mxu0 %v648
      %659 = vmatpush1.msra.mxu0 %v645
      %660 = vmatprep.subr.mxu0 0.0
      %661 = vmatpush1.msra.mxu0 0.0
      %662 = vmatprep.subr.mxu0 0.0
      %663 = vmatpush1.msra.mxu0 0.0
      %664 = vmatprep.subr.mxu0 0.0
      %665 = vmatpush1.msra.mxu0 0.0
      %666 = vmatprep.subr.mxu0 0.0
      %667 = vmatpush1.msra.mxu0 0.0
      %668 = vmatprep.subr.mxu0 0.0
      %669 = vmatpush1.msra.mxu0 0.0
      %670 = vmatprep.subr.mxu0 0.0
      %671 = vmatpush1.msra.mxu0 0.0
      %672 = vmatprep.subr.mxu0 0.0
      %673 = vmatpush1.msra.mxu0 0.0
      %674 = vmatprep.subr.mxu0 0.0
      %675 = vmatpush1.msra.mxu0 0.0
      %676 = vmatprep.subr.mxu0 0.0
      %677 = vmatpush1.msra.mxu0 0.0
      %678 = vmatprep.subr.mxu0 0.0
      %679 = vmatpush1.msra.mxu0 0.0
      %680 = vmatprep.subr.mxu0 0.0
      %681 = vmatpush1.msra.mxu0 0.0
      %682 = vmatprep.subr.mxu0 0.0
      %683 = vmatpush1.msra.mxu0 0.0
      %684 = vmatprep.subr.mxu0 0.0
      %685 = vmatpush1.msra.mxu0 0.0
      %686 = vmatprep.subr.mxu0 0.0
      %687 = vmatpush1.msra.mxu0 0.0
      %688 = vmatprep.subr.mxu0 0.0
      %689 = vmatpush1.msra.mxu0 0.0
      %690 = vmatprep.subr.mxu0 0.0
      %691 = vmatpush1.msra.mxu0 0.0
      %692 = vmatprep.subr.mxu0 0.0
      %693 = vmatpush1.msra.mxu0 0.0
      %694 = vmatprep.subr.mxu0 0.0
      %695 = vmatpush1.msra.mxu0 0.0
      %696 = vmatprep.subr.mxu0 0.0
      %697 = vmatpush1.msra.mxu0 0.0
      %698 = vmatprep.subr.mxu0 0.0
      %699 = vmatpush1.msra.mxu0 0.0
      %700 = vmatprep.subr.mxu0 0.0
      %701 = vmatpush1.msra.mxu0 0.0
      %702 = vmatprep.subr.mxu0 0.0
      %703 = vmatpush1.msra.mxu0 0.0
      %704 = vmatprep.subr.mxu0 0.0
      %705 = vmatpush1.msra.mxu0 0.0
      %706 = vmatprep.subr.mxu0 0.0
      %707 = vmatpush1.msra.mxu0 0.0
      %708 = vmatprep.subr.mxu0 0.0
      %709 = vmatpush1.msra.mxu0 0.0
      %710 = vmatprep.subr.mxu0 0.0
      %711 = vmatpush1.msra.mxu0 0.0
      %712 = vmatprep.subr.mxu0 0.0
      %713 = vmatpush1.msra.mxu0 0.0
      %714 = vmatprep.mubr.f32.mxu0 0.0
      %715 = vmatmul.mubr.f32.gmra.mrb[0].mxu0 %v642
      %v716 = vpop.f32.mrb[0].mxu0
      %v717 = vadd.f32 0.0, %v716
      %v718 = vpop.f32.mrb[0].mxu0
      %v719 = vadd.f32 0.0, %v718
      %720 = vdwg.mxu0
      %v721 = vld [vmem:[%s3] sm:$0xff]
      %723 = vset.pattern.permute.xlu0 0
      %724 = vperm.xlu0 %723, %v721
      %v725 = vpop.permute.xlu0 %724
      %v727 = vmul.f32 %v717, %v725
      %v728 = vmul.f32 %v719, %v725
      %v729 = vld [vmem:[%s4] sm:$0xff]
      %731 = vset.pattern.permute.xlu0 0
      %732 = vperm.xlu0 %731, %v729
      %v733 = vpop.permute.xlu0 %732
      %v735 = vadd.f32 %v727, %v733
      %v736 = vadd.f32 %v728, %v733
      %v737 = vmax.f32 %v735, 0.0
      %v738 = vmax.f32 %v736, 0.0
      %v739 = vld [vmem:[%s5] sm:$0xff]
      %741 = vrot.lane.b32.xlu0 %v738, 17
      %v742 = vpop.permute.xlu0 %741
      %745 = vrot.lane.b32.xlu0 %v737, 17
      %v746 = vpop.permute.xlu0 %745
      %v747 = vsel %vm396, %v746, %v742
      %v750 = vsel %vm396, %v742, %v746
      %v751 = vmul.f32 %v750, %v406
      %v752 = vmul.f32 %v747, %v410
      %753 = vrot.lane.b32.xlu0 %v738, 16
      %v754 = vpop.permute.xlu0 %753
      %756 = vrot.lane.b32.xlu0 %v737, 16
      %v757 = vpop.permute.xlu0 %756
      %v758 = vsel %vm420, %v757, %v754
      %v761 = vsel %vm420, %v754, %v757
      %v762 = vmul.f32 %v761, %v431
      %v763 = vmul.f32 %v758, %v435
      %764 = vrot.lane.b32.xlu0 %v738, 15
      %v765 = vpop.permute.xlu0 %764
      %767 = vrot.lane.b32.xlu0 %v737, 15
      %v768 = vpop.permute.xlu0 %767
      %v769 = vsel %vm445, %v768, %v765
      %v772 = vsel %vm445, %v765, %v768
      %v773 = vmul.f32 %v772, %v456
      %v774 = vmul.f32 %v769, %v460
      %775 = vrot.lane.b32.xlu0 %v738, 1
      %v776 = vpop.permute.xlu0 %775
      %778 = vrot.lane.b32.xlu0 %v737, 1
      %v779 = vpop.permute.xlu0 %778
      %v780 = vsel %vm470, %v779, %v776
      %v783 = vsel %vm470, %v776, %v779
      %v784 = vmul.f32 %v783, %v481
      %v785 = vmul.f32 %v780, %v485
      %v788 = vmul.f32 %v737, %v496
      %v789 = vmul.f32 %v738, %v500
      %790 = vrot.lane.b32.xlu0 %v737, 127
      %v791 = vpop.permute.xlu0 %790
      %792 = vrot.lane.b32.xlu0 %v738, 127
      %v793 = vpop.permute.xlu0 %792
      %v794 = vsel %vm508, %v791, %v793
      %v798 = vsel %vm508, %v793, %v791
      %v799 = vmul.f32 %v794, %v520
      %v800 = vmul.f32 %v798, %v524
      %801 = vrot.lane.b32.xlu0 %v737, 113
      %v802 = vpop.permute.xlu0 %801
      %803 = vrot.lane.b32.xlu0 %v738, 113
      %v804 = vpop.permute.xlu0 %803
      %v805 = vsel %vm533, %v802, %v804
      %v809 = vsel %vm533, %v804, %v802
      %v810 = vmul.f32 %v805, %v545
      %v811 = vmul.f32 %v809, %v549
      %812 = vrot.lane.b32.xlu0 %v737, 112
      %v813 = vpop.permute.xlu0 %812
      %814 = vrot.lane.b32.xlu0 %v738, 112
      %v815 = vpop.permute.xlu0 %814
      %v816 = vsel %vm558, %v813, %v815
      %v820 = vsel %vm558, %v815, %v813
      %v821 = vmul.f32 %v816, %v570
      %v822 = vmul.f32 %v820, %v574
      %823 = vrot.lane.b32.xlu0 %v737, 111
      %v824 = vpop.permute.xlu0 %823
      %825 = vrot.lane.b32.xlu0 %v738, 111
      %v826 = vpop.permute.xlu0 %825
      %v827 = vsel %vm583, %v824, %v826
      %v831 = vsel %vm583, %v826, %v824
      %v832 = vmul.f32 %v827, %v595
      %v833 = vmul.f32 %v831, %v599
      %vm834 = vcmask 588800
      %v836 = vsel %vm834, %v739, 0
      %838 = vmatprep.subr.mxu0 %v752
      %839 = vmatpush1.msra.mxu0 %v751
      %840 = vmatprep.subr.mxu0 %v763
      %841 = vmatpush1.msra.mxu0 %v762
      %842 = vmatprep.subr.mxu0 %v774
      %843 = vmatpush1.msra.mxu0 %v773
      %844 = vmatprep.subr.mxu0 %v785
      %845 = vmatpush1.msra.mxu0 %v784
      %846 = vmatprep.subr.mxu0 %v789
      %847 = vmatpush1.msra.mxu0 %v788
      %848 = vmatprep.subr.mxu0 %v800
      %849 = vmatpush1.msra.mxu0 %v799
      %850 = vmatprep.subr.mxu0 %v811
      %851 = vmatpush1.msra.mxu0 %v810
      %852 = vmatprep.subr.mxu0 %v822
      %853 = vmatpush1.msra.mxu0 %v821
      %854 = vmatprep.subr.mxu0 %v833
      %855 = vmatpush1.msra.mxu0 %v832
      %856 = vmatprep.subr.mxu0 0.0
      %857 = vmatpush1.msra.mxu0 0.0
      %858 = vmatprep.subr.mxu0 0.0
      %859 = vmatpush1.msra.mxu0 0.0
      %860 = vmatprep.subr.mxu0 0.0
      %861 = vmatpush1.msra.mxu0 0.0
      %862 = vmatprep.subr.mxu0 0.0
      %863 = vmatpush1.msra.mxu0 0.0
      %864 = vmatprep.subr.mxu0 0.0
      %865 = vmatpush1.msra.mxu0 0.0
      %866 = vmatprep.subr.mxu0 0.0
      %867 = vmatpush1.msra.mxu0 0.0
      %868 = vmatprep.subr.mxu0 0.0
      %869 = vmatpush1.msra.mxu0 0.0
      %870 = vmatprep.subr.mxu0 0.0
      %871 = vmatpush1.msra.mxu0 0.0
      %872 = vmatprep.subr.mxu0 0.0
      %873 = vmatpush1.msra.mxu0 0.0
      %874 = vmatprep.subr.mxu0 0.0
      %875 = vmatpush1.msra.mxu0 0.0
      %876 = vmatprep.subr.mxu0 0.0
      %877 = vmatpush1.msra.mxu0 0.0
      %878 = vmatprep.subr.mxu0 0.0
      %879 = vmatpush1.msra.mxu0 0.0
      %880 = vmatprep.subr.mxu0 0.0
      %881 = vmatpush1.msra.mxu0 0.0
      %882 = vmatprep.subr.mxu0 0.0
      %883 = vmatpush1.msra.mxu0 0.0
      %884 = vmatprep.subr.mxu0 0.0
      %885 = vmatpush1.msra.mxu0 0.0
      %886 = vmatprep.subr.mxu0 0.0
      %887 = vmatpush1.msra.mxu0 0.0
      %888 = vmatprep.subr.mxu0 0.0
      %889 = vmatpush1.msra.mxu0 0.0
      %890 = vmatprep.subr.mxu0 0.0
      %891 = vmatpush1.msra.mxu0 0.0
      %892 = vmatprep.subr.mxu0 0.0
      %893 = vmatpush1.msra.mxu0 0.0
      %894 = vmatprep.subr.mxu0 0.0
      %895 = vmatpush1.msra.mxu0 0.0
      %896 = vmatprep.subr.mxu0 0.0
      %897 = vmatpush1.msra.mxu0 0.0
      %898 = vmatprep.subr.mxu0 0.0
      %899 = vmatpush1.msra.mxu0 0.0
      %900 = vmatprep.subr.mxu0 0.0
      %901 = vmatpush1.msra.mxu0 0.0
      %902 = vmatprep.mubr.f32.mxu0 0.0
      %903 = vmatmul.mubr.f32.gmra.mrb[0].mxu0 %v836
      %v904 = vpop.f32.mrb[0].mxu0
      %v905 = vadd.f32 0.0, %v904
      %v906 = vpop.f32.mrb[0].mxu0
      %v907 = vadd.f32 0.0, %v906
      %908 = vdwg.mxu0
      %v909 = vld [vmem:[%s6] sm:$0xff]
      %911 = vset.pattern.permute.xlu0 0
      %912 = vperm.xlu0 %911, %v909
      %v913 = vpop.permute.xlu0 %912
      %v915 = vmul.f32 %v905, %v913
      %v916 = vmul.f32 %v907, %v913
      %v917 = vld [vmem:[%s7] sm:$0xff]
      %919 = vset.pattern.permute.xlu0 0
      %920 = vperm.xlu0 %919, %v917
      %v921 = vpop.permute.xlu0 %920
      %v923 = vadd.f32 %v915, %v921
      %v924 = vadd.f32 %v916, %v921
      %v925 = vmax.f32 %v923, 0.0
      %v926 = vmax.f32 %v924, 0.0
      %v927 = vld [vmem:[%s8] sm:$0xff]
      %vm928 = vcmask 31744
      %v930 = vsel %vm928, %v927, 0
      %v932 = vsel %vm631, %v387, 0
      %v934 = vsel %vm631, %v390, 0
      %936 = vmatprep.subr.mxu0 %v934
      %937 = vmatpush1.msra.mxu0 %v932
      %938 = vmatprep.subr.mxu0 0.0
      %939 = vmatpush1.msra.mxu0 0.0
      %940 = vmatprep.subr.mxu0 0.0
      %941 = vmatpush1.msra.mxu0 0.0
      %942 = vmatprep.subr.mxu0 0.0
      %943 = vmatpush1.msra.mxu0 0.0
      %944 = vmatprep.subr.mxu0 0.0
      %945 = vmatpush1.msra.mxu0 0.0
      %946 = vmatprep.subr.mxu0 0.0
      %947 = vmatpush1.msra.mxu0 0.0
      %948 = vmatprep.subr.mxu0 0.0
      %949 = vmatpush1.msra.mxu0 0.0
      %950 = vmatprep.subr.mxu0 0.0
      %951 = vmatpush1.msra.mxu0 0.0
      %952 = vmatprep.subr.mxu0 0.0
      %953 = vmatpush1.msra.mxu0 0.0
      %954 = vmatprep.subr.mxu0 0.0
      %955 = vmatpush1.msra.mxu0 0.0
      %956 = vmatprep.subr.mxu0 0.0
      %957 = vmatpush1.msra.mxu0 0.0
      %958 = vmatprep.subr.mxu0 0.0
      %959 = vmatpush1.msra.mxu0 0.0
      %960 = vmatprep.subr.mxu0 0.0
      %961 = vmatpush1.msra.mxu0 0.0
      %962 = vmatprep.subr.mxu0 0.0
      %963 = vmatpush1.msra.mxu0 0.0
      %964 = vmatprep.subr.mxu0 0.0
      %965 = vmatpush1.msra.mxu0 0.0
      %966 = vmatprep.subr.mxu0 0.0
      %967 = vmatpush1.msra.mxu0 0.0
      %968 = vmatprep.subr.mxu0 0.0
      %969 = vmatpush1.msra.mxu0 0.0
      %970 = vmatprep.subr.mxu0 0.0
      %971 = vmatpush1.msra.mxu0 0.0
      %972 = vmatprep.subr.mxu0 0.0
      %973 = vmatpush1.msra.mxu0 0.0
      %974 = vmatprep.subr.mxu0 0.0
      %975 = vmatpush1.msra.mxu0 0.0
      %976 = vmatprep.subr.mxu0 0.0
      %977 = vmatpush1.msra.mxu0 0.0
      %978 = vmatprep.subr.mxu0 0.0
      %979 = vmatpush1.msra.mxu0 0.0
      %980 = vmatprep.subr.mxu0 0.0
      %981 = vmatpush1.msra.mxu0 0.0
      %982 = vmatprep.subr.mxu0 0.0
      %983 = vmatpush1.msra.mxu0 0.0
      %984 = vmatprep.subr.mxu0 0.0
      %985 = vmatpush1.msra.mxu0 0.0
      %986 = vmatprep.subr.mxu0 0.0
      %987 = vmatpush1.msra.mxu0 0.0
      %988 = vmatprep.subr.mxu0 0.0
      %989 = vmatpush1.msra.mxu0 0.0
      %990 = vmatprep.subr.mxu0 0.0
      %991 = vmatpush1.msra.mxu0 0.0
      %992 = vmatprep.subr.mxu0 0.0
      %993 = vmatpush1.msra.mxu0 0.0
      %994 = vmatprep.subr.mxu0 0.0
      %995 = vmatpush1.msra.mxu0 0.0
      %996 = vmatprep.subr.mxu0 0.0
      %997 = vmatpush1.msra.mxu0 0.0
      %998 = vmatprep.subr.mxu0 0.0
      %999 = vmatpush1.msra.mxu0 0.0
      %1000 = vmatprep.mubr.f32.mxu0 0.0
      %1001 = vmatmul.mubr.f32.gmra.mrb[0].mxu0 %v930
      %v1002 = vpop.f32.mrb[0].mxu0
      %v1003 = vadd.f32 0.0, %v1002
      %v1004 = vpop.f32.mrb[0].mxu0
      %v1005 = vadd.f32 0.0, %v1004
      %1006 = vdwg.mxu0
      %v1007 = vld [vmem:[%s9] sm:$0xff]
      %1009 = vset.pattern.permute.xlu0 0
      %1010 = vperm.xlu0 %1009, %v1007
      %v1011 = vpop.permute.xlu0 %1010
      %v1013 = vmul.f32 %v1003, %v1011
      %v1014 = vmul.f32 %v1005, %v1011
      %v1015 = vld [vmem:[%s10] sm:$0xff]
      %1017 = vset.pattern.permute.xlu0 0
      %1018 = vperm.xlu0 %1017, %v1015
      %v1019 = vpop.permute.xlu0 %1018
      %v1021 = vadd.f32 %v1013, %v1019
      %v1022 = vadd.f32 %v1014, %v1019
      %v1023 = vadd.f32 %v925, %v1021
      %v1024 = vadd.f32 %v926, %v1022
      %1025 = vst [vmem:[%s386] sm:$0xff] %v1023
      %1026 = vst [vmem:[%s386 + $0x8] sm:$0xff] %v1024
      %p1027 = scmp.lt.s32.totalorder %s22, 1
      %s1028 = scalar_select %p1027, %s22, 1
      %s1029 = smul.addr %s1028, 2
      %s1030 = smul.addr %s1029, 8
      %s1031 = scalar_lea.vmem %s11, %s1030
      // Predicated region
      $region65: #{inconv_forward.1} parent=63 // pred_check
        %p1032 = pneg %p276
      $region66: #{inconv_forward.1} parent=63 // pred_check_branch
        %1034 = sbr.rel (%p1032) target = $region68
      $region67: #{inconv_forward.1} parent=63 // pred_region
        _
      $region68: #{inconv_forward.1} parent=63 // pred_fallthru
        _
    $region64: #{inconv_forward.1} parent=5 // pred_fallthru
      _
    %p1035 = scmp.le.s32.totalorder 2, %s17
    // Predicated region
    $region69: #{inconv_forward.1} parent=5 // pred_check
      %p1036 = pneg %p1035
    $region70: #{inconv_forward.1} parent=5 // pred_check_branch
      %1038 = sbr.rel (%p1036) target = $region72
    $region71: #{inconv_forward.1} parent=5 // pred_region
      %s1039 = ssub.s32 %s17, 2
      // Predicated region
      $region73: #{inconv_forward.1} parent=71 // pred_check
        %p1040 = pneg %p282
      $region74: #{inconv_forward.1} parent=71 // pred_check_branch
        %1042 = sbr.rel (%p1040) target = $region76
      $region75: #{inconv_forward.1} parent=71 // pred_region
        %p1043 = scmp.lt.s32.totalorder %s23, 1
        %s1044 = scalar_select %p1043, %s23, 1
        %s1045 = smul.addr %s1044, 2
        %s1046 = smul.addr %s1045, 8
        %s1047 = scalar_lea.vmem %s11, %s1046
      $region76: #{inconv_forward.1} parent=71 // pred_fallthru
        _
    $region72: #{inconv_forward.1} parent=5 // pred_fallthru
      _
  $region6: #{inconv_forward.1} parent=0 // loop_footer
    %s21 = sadd.s32 1, %s17
  $region7: #{inconv_forward.1} parent=0 // loop_footer_branch
    %16 = sbr.rel target = $region3
  $region8: #{inconv_forward.1} parent=0 // loop_exit
    _

</llo_original>
